<compile_context>
chip_gen: v6e
topology: v6e:2x2x1
jax: 0.10.0
libtpu: 0.0.40
codegen_flags: <defaults>
</compile_context>

<pallas_src>
import functools

import jax
import jax.numpy as jnp
from jax.experimental import pallas as pl
from jax.experimental.pallas import tpu as pltpu


_LANE = 128          # vreg lane width: batch elements are laid out along lanes
_NUM_SPLITS = 2      # leading "parallel" grid axis (uses both TensorCores on v7x)


def _focal_partial_kernel(x0_ref, x1_ref, t_ref, wnll_ref, wsum_ref, *, w0, w1):
    """Accumulate partial weighted-CE sums for one (block_rows, 128) batch slab.

    x0_ref / x1_ref : (bm, 128) logits for class 0 / class 1 (lane-dense batch)
    t_ref           : (bm, 128) int32 targets; -1 marks padding
    wnll_ref        : (1, 1, 1) accumulator of  sum_i w[y_i] * nll_i
    wsum_ref        : (1, 1, 1) accumulator of  sum_i w[y_i]
    """
    @pl.when(pl.program_id(1) == 0)
    def _():
        wnll_ref[...] = jnp.zeros_like(wnll_ref)
        wsum_ref[...] = jnp.zeros_like(wsum_ref)

    x0 = x0_ref[...].astype(jnp.float32)
    x1 = x1_ref[...].astype(jnp.float32)
    t = t_ref[...]

    # Numerically-stable 2-class log-softmax — fully elementwise (VPU + EUP).
    m = jnp.maximum(x0, x1)
    lse = m + jnp.log(jnp.exp(x0 - m) + jnp.exp(x1 - m))
    x_t = jnp.where(t == 1, x1, x0)
    nll = lse - x_t                                      # -log p(target)

    # Class weights as immediates; padded rows (t < 0) get weight 0 and drop out.
    w = jnp.where(t == 1, jnp.float32(w1), jnp.float32(w0))
    w = jnp.where(t >= 0, w, jnp.float32(0.0))

    wnll_ref[...] += jnp.sum(w * nll)
    wsum_ref[...] += jnp.sum(w)


def focal_loss(logits, target, *, gamma=2, out_num=2, max_block_rows=1024):
    """Pallas TPU implementation of FocalLoss.forward.

    logits: (N, 2) float array, target: (N,) int array.  Returns a scalar f32.
    """
    n, c = logits.shape
    assert c == out_num, (c, out_num)
    if out_num != 2:
        # TODO(synk): only the outNum==2 (module default, weighted CE) path is kernelized;
        # the general multi-class unweighted-CE path would need a different kernel.
        raise NotImplementedError("focal_loss Pallas kernel is specialized for outNum == 2")
    w0, w1 = 0.2, 0.8

    # ----- choose lane-dense tiling over the batch -----
    rows = -(-n // _LANE)                              # ceil(N / 128)
    rows_per_split = -(-rows // _NUM_SPLITS)
    block_rows = min(max_block_rows, rows_per_split)
    block_rows = -(-block_rows // 8) * 8               # sublane-aligned block
    grid_rows = -(-rows_per_split // block_rows)
    rows_total = _NUM_SPLITS * grid_rows * block_rows
    n_pad = rows_total * _LANE

    # ----- wrapper-side layout plumbing: batch -> lanes, one slab per class -----
    x0 = logits[:, 0]
    x1 = logits[:, 1]
    t = target.astype(jnp.int32)
    pad = n_pad - n
    if pad:
        x0 = jnp.pad(x0, (0, pad))                     # padded logits are irrelevant:
        x1 = jnp.pad(x1, (0, pad))                     # their weight is forced to 0
        t = jnp.pad(t, (0, pad), constant_values=-1)
    x0 = x0.reshape(rows_total, _LANE)
    x1 = x1.reshape(rows_total, _LANE)
    t = t.reshape(rows_total, _LANE)

    slab_spec = pl.BlockSpec((block_rows, _LANE),
                             lambda s, i: (s * grid_rows + i, 0))
    acc_spec = pl.BlockSpec((1, 1, 1), lambda s, i: (s, 0, 0))

    wnll, wsum = pl.pallas_call(
        functools.partial(_focal_partial_kernel, w0=w0, w1=w1),
        out_shape=(jax.ShapeDtypeStruct((_NUM_SPLITS, 1, 1), jnp.float32),
                   jax.ShapeDtypeStruct((_NUM_SPLITS, 1, 1), jnp.float32)),
        grid_spec=pltpu.PrefetchScalarGridSpec(
            num_scalar_prefetch=0,
            grid=(_NUM_SPLITS, grid_rows),
            in_specs=[slab_spec, slab_spec, slab_spec],
            out_specs=[acc_spec, acc_spec],
        ),
        compiler_params=pltpu.CompilerParams(
            dimension_semantics=("parallel", "arbitrary")),
    )(x0, x1, t)

    # ----- scalar epilogue in plain JAX (4 scalars) -----
    logp = jnp.sum(wnll) / jnp.sum(wsum)               # weighted-mean cross entropy
    p = jnp.exp(-logp)
    omp = 1.0 - p
    focal = omp * omp if gamma == 2 else omp ** gamma  # explicit square for gamma=2
    return focal * logp


def focal_loss_ref(logits, target, *, gamma=2, out_num=2):
    """Pure-JAX reference for sanity checking."""
    c = logits.shape[1]
    if out_num == 2:
        weight = jnp.array([0.2, 0.8], dtype=jnp.float32)
    else:
        weight = jnp.ones((c,), dtype=jnp.float32)
    tgt = target.astype(jnp.int32)
    logprob = jax.nn.log_softmax(logits.astype(jnp.float32), axis=-1)
    nll = -jnp.take_along_axis(logprob, tgt[:, None], axis=-1)[:, 0]
    w_i = weight[tgt]
    logp = jnp.sum(w_i * nll) / jnp.sum(w_i)
    p = jnp.exp(-logp)
    return (1.0 - p) ** gamma * logp


if __name__ == "__main__":
    key = jax.random.PRNGKey(0)
    k1, k2, k3, k4 = jax.random.split(key, 4)

    # Small shape matching the module defaults (outNum == 2 classes).
    N, C = 8, 2
    logits = jax.random.normal(k1, (N, C), dtype=jnp.float32)
    target = jax.random.randint(k2, (N,), 0, C, dtype=jnp.int32)
    out = jax.block_until_ready(focal_loss(logits, target, gamma=2, out_num=C))
    ref = focal_loss_ref(logits, target, gamma=2, out_num=C)
    assert jnp.allclose(out, ref, atol=1e-5, rtol=1e-4), (out, ref)

    # Exercise the tiled multi-block path (2 parallel splits x 2 inner row-chunks).
    N2 = 4096
    logits2 = jax.random.normal(k3, (N2, C), dtype=jnp.float32)
    target2 = jax.random.randint(k4, (N2,), 0, C, dtype=jnp.int32)
    out2 = jax.block_until_ready(
        focal_loss(logits2, target2, gamma=2, out_num=C, max_block_rows=8))
    ref2 = focal_loss_ref(logits2, target2, gamma=2, out_num=C)
    assert jnp.allclose(out2, ref2, atol=1e-5, rtol=1e-4), (out2, ref2)

    print("KERNEL_OK")
</pallas_src>

<mosaic_0001>
module attributes {stable_mosaic.version = 11 : i64} {
  func.func @_focal_partial_kernel(%arg0: i32, %arg1: i32, %arg2: memref<8x128xf32, #tpu.memory_space<vmem>>, %arg3: memref<8x128xf32, #tpu.memory_space<vmem>>, %arg4: memref<8x128xi32, #tpu.memory_space<vmem>>, %arg5: memref<1x1x1xf32, #tpu.memory_space<vmem>>, %arg6: memref<1x1x1xf32, #tpu.memory_space<vmem>>) attributes {dimension_semantics = [#tpu.dimension_semantics<parallel>, #tpu.dimension_semantics<arbitrary>], iteration_bounds = array<i64: 2, 1>, scalar_prefetch = 0 : i64, scratch_operands = 0 : i64, tpu.core_type = #tpu.core_type<tc>, window_params = [{transform_indices = @transform_0, window_bounds = array<i64: 8, 128>}, {transform_indices = @transform_1, window_bounds = array<i64: 8, 128>}, {transform_indices = @transform_2, window_bounds = array<i64: 8, 128>}, {transform_indices = @transform_3, window_bounds = array<i64: 1, 1, 1>}, {transform_indices = @transform_4, window_bounds = array<i64: 1, 1, 1>}]} {
    %c0_i32 = arith.constant 0 : i32
    %0 = arith.cmpi eq, %arg1, %c0_i32 : i32
    %1 = arith.extui %0 : i1 to i32
    %c0_i32_0 = arith.constant 0 : i32
    %2 = arith.cmpi ne, %1, %c0_i32_0 : i32
    scf.if %2 {
      %cst_24 = arith.constant 0.000000e+00 : f32
      %44 = vector.broadcast %cst_24 : f32 to vector<1x1x1xf32>
      %c0_25 = arith.constant 0 : index
      %c0_26 = arith.constant 0 : index
      %c0_27 = arith.constant 0 : index
      %45 = vector.load %arg5[%c0_25, %c0_26, %c0_27] : memref<1x1x1xf32, #tpu.memory_space<vmem>>, vector<1x1x1xf32>
      tpu.vector_store %arg5[%c0_25, %c0_26, %c0_27], %44 {strides = array<i32>} : memref<1x1x1xf32, #tpu.memory_space<vmem>>, vector<1x1x1xf32>,
      %cst_28 = arith.constant 0.000000e+00 : f32
      %46 = vector.broadcast %cst_28 : f32 to vector<1x1x1xf32>
      %c0_29 = arith.constant 0 : index
      %c0_30 = arith.constant 0 : index
      %c0_31 = arith.constant 0 : index
      %47 = vector.load %arg6[%c0_29, %c0_30, %c0_31] : memref<1x1x1xf32, #tpu.memory_space<vmem>>, vector<1x1x1xf32>
      tpu.vector_store %arg6[%c0_29, %c0_30, %c0_31], %46 {strides = array<i32>} : memref<1x1x1xf32, #tpu.memory_space<vmem>>, vector<1x1x1xf32>,
    } else {
    }
    %c0 = arith.constant 0 : index
    %c0_1 = arith.constant 0 : index
    %3 = vector.load %arg2[%c0, %c0_1] : memref<8x128xf32, #tpu.memory_space<vmem>>, vector<8x128xf32>
    %c0_2 = arith.constant 0 : index
    %c0_3 = arith.constant 0 : index
    %4 = vector.load %arg3[%c0_2, %c0_3] : memref<8x128xf32, #tpu.memory_space<vmem>>, vector<8x128xf32>
    %c0_4 = arith.constant 0 : index
    %c0_5 = arith.constant 0 : index
    %5 = vector.load %arg4[%c0_4, %c0_5] : memref<8x128xi32, #tpu.memory_space<vmem>>, vector<8x128xi32>
    %6 = arith.maximumf %3, %4 : vector<8x128xf32>
    %7 = arith.subf %3, %6 : vector<8x128xf32>
    %8 = math.exp %7 : vector<8x128xf32>
    %9 = arith.subf %4, %6 : vector<8x128xf32>
    %10 = math.exp %9 : vector<8x128xf32>
    %11 = arith.addf %8, %10 : vector<8x128xf32>
    %12 = math.log %11 : vector<8x128xf32>
    %13 = arith.addf %6, %12 : vector<8x128xf32>
    %c1_i32 = arith.constant 1 : i32
    %14 = vector.broadcast %c1_i32 : i32 to vector<8x128xi32>
    %15 = arith.cmpi eq, %5, %14 : vector<8x128xi32>
    %16 = arith.select %15, %4, %3 : vector<8x128xi1>, vector<8x128xf32>
    %17 = arith.subf %13, %16 : vector<8x128xf32>
    %c1_i32_6 = arith.constant 1 : i32
    %18 = vector.broadcast %c1_i32_6 : i32 to vector<8x128xi32>
    %19 = arith.cmpi eq, %5, %18 : vector<8x128xi32>
    %cst = arith.constant 8.000000e-01 : f32
    %cst_7 = arith.constant 2.000000e-01 : f32
    %20 = vector.broadcast %cst : f32 to vector<8x128xf32>
    %21 = vector.broadcast %cst_7 : f32 to vector<8x128xf32>
    %22 = arith.select %19, %20, %21 : vector<8x128xi1>, vector<8x128xf32>
    %c0_i32_8 = arith.constant 0 : i32
    %23 = vector.broadcast %c0_i32_8 : i32 to vector<8x128xi32>
    %24 = arith.cmpi sge, %5, %23 : vector<8x128xi32>
    %cst_9 = arith.constant 0.000000e+00 : f32
    %25 = vector.broadcast %cst_9 : f32 to vector<8x128xf32>
    %26 = arith.select %24, %22, %25 : vector<8x128xi1>, vector<8x128xf32>
    %c0_10 = arith.constant 0 : index
    %c0_11 = arith.constant 0 : index
    %c0_12 = arith.constant 0 : index
    %27 = vector.load %arg5[%c0_10, %c0_11, %c0_12] : memref<1x1x1xf32, #tpu.memory_space<vmem>>, vector<1x1x1xf32>
    %28 = arith.mulf %26, %17 : vector<8x128xf32>
    %29 = vector.shape_cast %28 : vector<8x128xf32> to vector<1x8x128xf32>
    %cst_13 = arith.constant dense<0.000000e+00> : vector<1xf32>
    %30 = vector.multi_reduction <add>, %29, %cst_13 [1, 2] : vector<1x8x128xf32> to vector<1xf32>
    %31 = vector.shape_cast %30 : vector<1xf32> to vector<1x1x1xf32>
    %32 = vector.extract %31[0, 0, 0] : f32 from vector<1x1x1xf32>
    %33 = vector.broadcast %32 : f32 to vector<1x1x1xf32>
    %34 = arith.addf %27, %33 : vector<1x1x1xf32>
    %c0_14 = arith.constant 0 : index
    %c0_15 = arith.constant 0 : index
    %c0_16 = arith.constant 0 : index
    %35 = vector.load %arg5[%c0_14, %c0_15, %c0_16] : memref<1x1x1xf32, #tpu.memory_space<vmem>>, vector<1x1x1xf32>
    tpu.vector_store %arg5[%c0_14, %c0_15, %c0_16], %34 {strides = array<i32>} : memref<1x1x1xf32, #tpu.memory_space<vmem>>, vector<1x1x1xf32>,
    %c0_17 = arith.constant 0 : index
    %c0_18 = arith.constant 0 : index
    %c0_19 = arith.constant 0 : index
    %36 = vector.load %arg6[%c0_17, %c0_18, %c0_19] : memref<1x1x1xf32, #tpu.memory_space<vmem>>, vector<1x1x1xf32>
    %37 = vector.shape_cast %26 : vector<8x128xf32> to vector<1x8x128xf32>
    %cst_20 = arith.constant dense<0.000000e+00> : vector<1xf32>
    %38 = vector.multi_reduction <add>, %37, %cst_20 [1, 2] : vector<1x8x128xf32> to vector<1xf32>
    %39 = vector.shape_cast %38 : vector<1xf32> to vector<1x1x1xf32>
    %40 = vector.extract %39[0, 0, 0] : f32 from vector<1x1x1xf32>
    %41 = vector.broadcast %40 : f32 to vector<1x1x1xf32>
    %42 = arith.addf %36, %41 : vector<1x1x1xf32>
    %c0_21 = arith.constant 0 : index
    %c0_22 = arith.constant 0 : index
    %c0_23 = arith.constant 0 : index
    %43 = vector.load %arg6[%c0_21, %c0_22, %c0_23] : memref<1x1x1xf32, #tpu.memory_space<vmem>>, vector<1x1x1xf32>
    tpu.vector_store %arg6[%c0_21, %c0_22, %c0_23], %42 {strides = array<i32>} : memref<1x1x1xf32, #tpu.memory_space<vmem>>, vector<1x1x1xf32>,
    return
  }
  func.func @transform_0(%arg0: i32, %arg1: i32) -> (i32, i32) {
    %c1_i32 = arith.constant 1 : i32
    %0 = arith.muli %arg0, %c1_i32 : i32
    %1 = arith.addi %0, %arg1 : i32
    %c0_i32 = arith.constant 0 : i32
    %c0_i32_0 = arith.constant 0 : i32
    return %1, %c0_i32 : i32, i32
  }
  func.func @transform_1(%arg0: i32, %arg1: i32) -> (i32, i32) {
    %c1_i32 = arith.constant 1 : i32
    %0 = arith.muli %arg0, %c1_i32 : i32
    %1 = arith.addi %0, %arg1 : i32
    %c0_i32 = arith.constant 0 : i32
    %c0_i32_0 = arith.constant 0 : i32
    return %1, %c0_i32 : i32, i32
  }
  func.func @transform_2(%arg0: i32, %arg1: i32) -> (i32, i32) {
    %c1_i32 = arith.constant 1 : i32
    %0 = arith.muli %arg0, %c1_i32 : i32
    %1 = arith.addi %0, %arg1 : i32
    %c0_i32 = arith.constant 0 : i32
    %c0_i32_0 = arith.constant 0 : i32
    return %1, %c0_i32 : i32, i32
  }
  func.func @transform_3(%arg0: i32, %arg1: i32) -> (i32, i32, i32) {
    %c0_i32 = arith.constant 0 : i32
    %c0_i32_0 = arith.constant 0 : i32
    %c0_i32_1 = arith.constant 0 : i32
    return %arg0, %c0_i32, %c0_i32_0 : i32, i32, i32
  }
  func.func @transform_4(%arg0: i32, %arg1: i32) -> (i32, i32, i32) {
    %c0_i32 = arith.constant 0 : i32
    %c0_i32_0 = arith.constant 0 : i32
    %c0_i32_1 = arith.constant 0 : i32
    return %arg0, %c0_i32, %c0_i32_0 : i32, i32, i32
  }
}

</mosaic_0001>

<llo_original>
// kernel: tpu_custom_call.1
$region0: #{tpu_custom_call.1}
  #allocation0 [shape = 'u32[]', space=smem, size = 0x4, offset = 0x4, fixed_abs, tag = 'smem constant byte address 0x4 - core index']
  #allocation1 [shape = 'u32[144,128]{1,0:T(1,128)}', space=vmem, size = 0x12000, scoped, tag = 'internal scratch']
  %s0 = inlined_call_operand.hbm [shape: f32[16,128], index: 0, kind: input, shape index: {}]
  %s1 = inlined_call_operand.hbm [shape: f32[16,128], index: 1, kind: input, shape index: {}]
  %s2 = inlined_call_operand.hbm [shape: s32[16,128], index: 2, kind: input, shape index: {}]
  %s3 = inlined_call_operand.vmem [shape: f32[2,1,1], index: 3, kind: output, shape index: {0}]
  %s4 = inlined_call_operand.vmem [shape: f32[2,1,1], index: 4, kind: output, shape index: {1}]
  %5 = xla_tuple %s3, %s4
  %s6 = sld [smem:[#allocation0]]
  $region69: #{tpu_custom_call.1} parent=0
    _
  %s8 = ssub.s32 1, %s6
  %s9 = scalar_select 0, %s8, %s6
  $region1: #{tpu_custom_call.1} parent=0
    #allocation2 [shape = 'u8[8192]{0}', space=vmem, size = 0x2000, scoped, tag = 'input window, operand 0']
    #allocation3 [shape = 's32[2]{0}', space=sflag, size = 0x8, scoped, tag = 'scoped memory for tpu_custom_call.1']
    #allocation4 [shape = 'u8[8192]{0}', space=vmem, size = 0x2000, scoped, tag = 'input window, operand 1']
    #allocation5 [shape = 's32[2]{0}', space=sflag, size = 0x8, scoped, tag = 'scoped memory for tpu_custom_call.1']
    #allocation6 [shape = 'u8[8192]{0}', space=vmem, size = 0x2000, scoped, tag = 'input window, operand 2']
    %10 = vsyncpa [#allocation3], 0
    %s11 = scalar_lea.sflag [#allocation3], 1
    %12 = vsyncpa %s11, 0
    %13 = vsyncpa [#allocation5], 0
    %s14 = scalar_lea.sflag [#allocation5], 1
    %15 = vsyncpa %s14, 0
    loop: start=0, step=1, limit=4
    $region2: #{tpu_custom_call.1} parent=1 // loop_pre_header
      _
    $region3: #{tpu_custom_call.1} parent=1 // loop_header
      %s17 = sphi 0, %s21
      %p18 = scmp.ge.s32.totalorder %s17, 4
      %s24 = sphi 0, %s36
      %s25 = sphi 0, %s32
      %s26 = sphi 0, %s24
      %s27 = sphi 0, %s25
      %s28 = sphi 0, %s26
      %s29 = sphi 0, %s27
      %s41 = sphi 0, %s43
      %s44 = sphi 0, %s41
      %s45 = sphi 0, %s44
      %s61 = sphi 0, %s45
      %s69 = sphi 0, %s71
      %s72 = sphi 0, %s69
      %s73 = sphi 0, %s72
      %s89 = sphi 0, %s73
      %s97 = sphi 0, %s99
      %s100 = sphi 0, %s97
      %s101 = sphi 0, %s100
      %s117 = sphi 0, %s101
      %s123 = sphi 0, %s125
      %s126 = sphi 0, %s123
      %s127 = sphi 0, %s126
      %s143 = sphi 0, %s127
      %s149 = sphi 0, %s151
      %s152 = sphi 0, %s149
      %s153 = sphi 0, %s152
      %s169 = sphi 0, %s153
    $region4: #{tpu_custom_call.1} parent=1 // loop_header_branch
      %20 = sbr.rel (%p18) target = $region8
    $region5: #{tpu_custom_call.1} parent=1 // loop_body
      %s22 = ssub.s32 %s17, 1
      %s23 = ssub.s32 %s17, 2
      %s30 = sadd.s32 1, %s25
      %p31 = scmp.ge.s32.totalorder %s30, 1
      %s32 = scalar_select %p31, 0, %s30
      %s33 = sadd.s32 1, %s24
      %s34 = scalar_select %p31, %s33, %s24
      %p35 = scmp.ge.s32.totalorder %s34, 2
      %s36 = scalar_select %p35, 0, %s34
      %s37 = sadd.s32 %s24, %s25
      %s38 = sadd.s32 %s36, %s32
      %s39 = ssub.s32 %s37, %s38
      %p40 = scmp.eq.s32.totalorder %s39, 0
      %s42 = sadd.s32 %s41, 1
      %s43 = scalar_select %p40, %s41, %s42
      %p46 = pneg %p40
      %p47 = scmp.eq.s32.totalorder %s17, 1
      %p48 = por %p46, %p47
      %p49 = scmp.ne.s32.totalorder %s41, %s44
      %p50 = scmp.eq.s32.totalorder %s17, 0
      %p51 = por %p49, %p50
      %p52 = scmp.ne.s32.totalorder %s41, %s44
      %p53 = scmp.eq.s32.totalorder %s22, 1
      %p54 = por %p52, %p53
      %p55 = scmp.ne.s32.totalorder %s44, %s45
      %p56 = scmp.eq.s32.totalorder %s22, 0
      %p57 = por %p55, %p56
      %p58 = scmp.ne.s32.totalorder %s44, %s45
      %p59 = scmp.eq.s32.totalorder %s23, 1
      %p60 = por %p58, %p59
      %p62 = scmp.ne.s32.totalorder %s45, %s61
      %p63 = scmp.eq.s32.totalorder %s23, 0
      %p64 = por %p62, %p63
      %s65 = sadd.s32 %s24, %s25
      %s66 = sadd.s32 %s36, %s32
      %s67 = ssub.s32 %s65, %s66
      %p68 = scmp.eq.s32.totalorder %s67, 0
      %s70 = sadd.s32 %s69, 1
      %s71 = scalar_select %p68, %s69, %s70
      %p74 = pneg %p68
      %p75 = scmp.eq.s32.totalorder %s17, 1
      %p76 = por %p74, %p75
      %p77 = scmp.ne.s32.totalorder %s69, %s72
      %p78 = scmp.eq.s32.totalorder %s17, 0
      %p79 = por %p77, %p78
      %p80 = scmp.ne.s32.totalorder %s69, %s72
      %p81 = scmp.eq.s32.totalorder %s22, 1
      %p82 = por %p80, %p81
      %p83 = scmp.ne.s32.totalorder %s72, %s73
      %p84 = scmp.eq.s32.totalorder %s22, 0
      %p85 = por %p83, %p84
      %p86 = scmp.ne.s32.totalorder %s72, %s73
      %p87 = scmp.eq.s32.totalorder %s23, 1
      %p88 = por %p86, %p87
      %p90 = scmp.ne.s32.totalorder %s73, %s89
      %p91 = scmp.eq.s32.totalorder %s23, 0
      %p92 = por %p90, %p91
      %s93 = sadd.s32 %s24, %s25
      %s94 = sadd.s32 %s36, %s32
      %s95 = ssub.s32 %s93, %s94
      %p96 = scmp.eq.s32.totalorder %s95, 0
      %s98 = sadd.s32 %s97, 1
      %s99 = scalar_select %p96, %s97, %s98
      %p102 = pneg %p96
      %p103 = scmp.eq.s32.totalorder %s17, 1
      %p104 = por %p102, %p103
      %p105 = scmp.ne.s32.totalorder %s97, %s100
      %p106 = scmp.eq.s32.totalorder %s17, 0
      %p107 = por %p105, %p106
      %p108 = scmp.ne.s32.totalorder %s97, %s100
      %p109 = scmp.eq.s32.totalorder %s22, 1
      %p110 = por %p108, %p109
      %p111 = scmp.ne.s32.totalorder %s100, %s101
      %p112 = scmp.eq.s32.totalorder %s22, 0
      %p113 = por %p111, %p112
      %p114 = scmp.ne.s32.totalorder %s100, %s101
      %p115 = scmp.eq.s32.totalorder %s23, 1
      %p116 = por %p114, %p115
      %p118 = scmp.ne.s32.totalorder %s101, %s117
      %p119 = scmp.eq.s32.totalorder %s23, 0
      %p120 = por %p118, %p119
      %s121 = ssub.s32 %s24, %s36
      %p122 = scmp.eq.s32.totalorder %s121, 0
      %s124 = sadd.s32 %s123, 1
      %s125 = scalar_select %p122, %s123, %s124
      %p128 = pneg %p122
      %p129 = scmp.eq.s32.totalorder %s17, 1
      %p130 = por %p128, %p129
      %p131 = scmp.ne.s32.totalorder %s123, %s126
      %p132 = scmp.eq.s32.totalorder %s17, 0
      %p133 = por %p131, %p132
      %p134 = scmp.ne.s32.totalorder %s123, %s126
      %p135 = scmp.eq.s32.totalorder %s22, 1
      %p136 = por %p134, %p135
      %p137 = scmp.ne.s32.totalorder %s126, %s127
      %p138 = scmp.eq.s32.totalorder %s22, 0
      %p139 = por %p137, %p138
      %p140 = scmp.ne.s32.totalorder %s126, %s127
      %p141 = scmp.eq.s32.totalorder %s23, 1
      %p142 = por %p140, %p141
      %p144 = scmp.ne.s32.totalorder %s127, %s143
      %p145 = scmp.eq.s32.totalorder %s23, 0
      %p146 = por %p144, %p145
      %s147 = ssub.s32 %s24, %s36
      %p148 = scmp.eq.s32.totalorder %s147, 0
      %s150 = sadd.s32 %s149, 1
      %s151 = scalar_select %p148, %s149, %s150
      %p154 = pneg %p148
      %p155 = scmp.eq.s32.totalorder %s17, 1
      %p156 = por %p154, %p155
      %p157 = scmp.ne.s32.totalorder %s149, %s152
      %p158 = scmp.eq.s32.totalorder %s17, 0
      %p159 = por %p157, %p158
      %p160 = scmp.ne.s32.totalorder %s149, %s152
      %p161 = scmp.eq.s32.totalorder %s22, 1
      %p162 = por %p160, %p161
      %p163 = scmp.ne.s32.totalorder %s152, %s153
      %p164 = scmp.eq.s32.totalorder %s22, 0
      %p165 = por %p163, %p164
      %p166 = scmp.ne.s32.totalorder %s152, %s153
      %p167 = scmp.eq.s32.totalorder %s23, 1
      %p168 = por %p166, %p167
      %p170 = scmp.ne.s32.totalorder %s153, %s169
      %p171 = scmp.eq.s32.totalorder %s23, 0
      %p172 = por %p170, %p171
      %p173 = scmp.le.s32.totalorder 1, %s17
      %p174 = scmp.lt.s32.totalorder %s17, 3
      %p175 = pnand %p173, %p174
      %p176 = pneg %p175
      // Predicated region
      $region9: #{tpu_custom_call.1} parent=5 // pred_check
        _
      $region10: #{tpu_custom_call.1} parent=5 // pred_check_branch
        %178 = sbr.rel (%p175) target = $region12
      $region11: #{tpu_custom_call.1} parent=5 // pred_region
        %s179 = ssub.s32 %s17, 1
      $region12: #{tpu_custom_call.1} parent=5 // pred_fallthru
        _
      %p180 = scmp.lt.s32.totalorder %s17, 2
      // Predicated region
      $region13: #{tpu_custom_call.1} parent=5 // pred_check
        %p181 = pneg %p180
      $region14: #{tpu_custom_call.1} parent=5 // pred_check_branch
        %183 = sbr.rel (%p181) target = $region16
      $region15: #{tpu_custom_call.1} parent=5 // pred_region
        // Predicated region
        $region17: #{tpu_custom_call.1} parent=15 // pred_check
          %p184 = pneg %p51
        $region18: #{tpu_custom_call.1} parent=15 // pred_check_branch
          %186 = sbr.rel (%p184) target = $region20
        $region19: #{tpu_custom_call.1} parent=15 // pred_region
          %s187 = sand.u32 %s41, 1
          %s188 = scalar_lea.sflag [#allocation3], %s187
          %s189 = sand.u32 %s41, 1
          %s190 = smul.addr %s189, 8
          %s191 = scalar_lea.vmem [#allocation2], %s190
          %s192 = sadd.s32 %s24, %s25
          %s194 = ssub.s32 128, 128
          %195 = vsyncadd %s188, %s194
          %s196 = smul.addr %s192, 128
          %s197 = scalar_lea.hbm %s0, %s196
          %s199 = sshll.u32 %s191, 4
          %s200 = int_to_ptr.vmem [resolvable:$true] %s199
          %202 = dma.hbm_to_vmem [thread:$0]  %s197, 128, %s200, %s188
        $region20: #{tpu_custom_call.1} parent=15 // pred_fallthru
          _
        // Predicated region
        $region21: #{tpu_custom_call.1} parent=15 // pred_check
          %p203 = pneg %p79
        $region22: #{tpu_custom_call.1} parent=15 // pred_check_branch
          %205 = sbr.rel (%p203) target = $region24
        $region23: #{tpu_custom_call.1} parent=15 // pred_region
          %s206 = sand.u32 %s17, 1
          %s207 = scalar_lea.sflag [#allocation5], %s206
          %s208 = sand.u32 %s69, 1
          %s209 = smul.addr %s208, 8
          %s210 = scalar_lea.vmem [#allocation4], %s209
          %s211 = sadd.s32 %s24, %s25
          %s213 = ssub.s32 128, 128
          %214 = vsyncadd %s207, %s213
          %s215 = smul.addr %s211, 128
          %s216 = scalar_lea.hbm %s1, %s215
          %s218 = sshll.u32 %s210, 4
          %s219 = int_to_ptr.vmem [resolvable:$true] %s218
          %221 = dma.hbm_to_vmem [thread:$0]  %s216, 128, %s219, %s207
        $region24: #{tpu_custom_call.1} parent=15 // pred_fallthru
          _
        // Predicated region
        $region25: #{tpu_custom_call.1} parent=15 // pred_check
          %p222 = pneg %p107
        $region26: #{tpu_custom_call.1} parent=15 // pred_check_branch
          %224 = sbr.rel (%p222) target = $region28
        $region27: #{tpu_custom_call.1} parent=15 // pred_region
          %s225 = sand.u32 %s17, 1
          %s226 = scalar_lea.sflag [#allocation5], %s225
          %s227 = sand.u32 %s97, 1
          %s228 = smul.addr %s227, 8
          %s229 = scalar_lea.vmem [#allocation6], %s228
          %s230 = sadd.s32 %s24, %s25
          %s232 = ssub.s32 128, 128
          %233 = vsyncadd %s226, %s232
          %s234 = smul.addr %s230, 128
          %s235 = scalar_lea.hbm %s2, %s234
          %s237 = sshll.u32 %s229, 4
          %s238 = int_to_ptr.vmem [resolvable:$true] %s237
          %240 = dma.hbm_to_vmem [thread:$0]  %s235, 128, %s238, %s226
        $region28: #{tpu_custom_call.1} parent=15 // pred_fallthru
          _
      $region16: #{tpu_custom_call.1} parent=5 // pred_fallthru
        _
      %p241 = scmp.le.s32.totalorder 1, %s17
      %p242 = scmp.lt.s32.totalorder %s17, 3
      %p243 = pnand %p241, %p242
      %p244 = pneg %p243
      // Predicated region
      $region29: #{tpu_custom_call.1} parent=5 // pred_check
        _
      $region30: #{tpu_custom_call.1} parent=5 // pred_check_branch
        %246 = sbr.rel (%p243) target = $region32
      $region31: #{tpu_custom_call.1} parent=5 // pred_region
        %s247 = ssub.s32 %s17, 1
        %s248 = sand.u32 %s44, 1
        %s249 = scalar_lea.sflag [#allocation3], %s248
        %s250 = sand.u32 %s44, 1
        %s251 = smul.addr %s250, 8
        %s252 = scalar_lea.vmem [#allocation2], %s251
        // Predicated region
        $region33: #{tpu_custom_call.1} parent=31 // pred_check
          %p253 = pneg %p57
        $region34: #{tpu_custom_call.1} parent=31 // pred_check_branch
          %255 = sbr.rel (%p253) target = $region36
        $region35: #{tpu_custom_call.1} parent=31 // pred_region
          %256 = dma.done %s249, 128
        $region36: #{tpu_custom_call.1} parent=31 // pred_fallthru
          _
        %s257 = sand.u32 %s22, 1
        %s258 = scalar_lea.sflag [#allocation5], %s257
        %s259 = sand.u32 %s72, 1
        %s260 = smul.addr %s259, 8
        %s261 = scalar_lea.vmem [#allocation4], %s260
        // Predicated region
        $region37: #{tpu_custom_call.1} parent=31 // pred_check
          %p262 = pneg %p85
        $region38: #{tpu_custom_call.1} parent=31 // pred_check_branch
          %264 = sbr.rel (%p262) target = $region40
        $region39: #{tpu_custom_call.1} parent=31 // pred_region
          %265 = dma.done %s258, 128
        $region40: #{tpu_custom_call.1} parent=31 // pred_fallthru
          _
        %s266 = sand.u32 %s22, 1
        %s267 = scalar_lea.sflag [#allocation5], %s266
        %s268 = sand.u32 %s100, 1
        %s269 = smul.addr %s268, 8
        %s270 = scalar_lea.vmem [#allocation6], %s269
        // Predicated region
        $region41: #{tpu_custom_call.1} parent=31 // pred_check
          %p271 = pneg %p113
        $region42: #{tpu_custom_call.1} parent=31 // pred_check_branch
          %273 = sbr.rel (%p271) target = $region44
        $region43: #{tpu_custom_call.1} parent=31 // pred_region
          %274 = dma.done %s267, 128
        $region44: #{tpu_custom_call.1} parent=31 // pred_fallthru
          _
        %s275 = sand.u32 %s44, 1
        %s276 = scalar_lea.sflag [#allocation3], %s275
        %s277 = sand.u32 %s44, 1
        %s278 = smul.addr %s277, 8
        %s279 = scalar_lea.vmem [#allocation2], %s278
        %p280 = pneg %p57
        %p281 = pneg %p54
        %s282 = sand.u32 %s22, 1
        %s283 = scalar_lea.sflag [#allocation5], %s282
        %s284 = sand.u32 %s72, 1
        %s285 = smul.addr %s284, 8
        %s286 = scalar_lea.vmem [#allocation4], %s285
        %p287 = pneg %p85
        %p288 = pneg %p82
        %s289 = sand.u32 %s22, 1
        %s290 = scalar_lea.sflag [#allocation5], %s289
        %s291 = sand.u32 %s100, 1
        %s292 = smul.addr %s291, 8
        %s293 = scalar_lea.vmem [#allocation6], %s292
        %p294 = pneg %p113
        %p295 = pneg %p110
        %p296 = pneg %p139
        %p297 = pneg %p136
        %p298 = scmp.lt.s32.totalorder %s26, 1
        %s299 = scalar_select %p298, %s26, 1
        %s300 = scalar_lea.vmem %s3, %s299
        %p301 = pneg %p165
        %p302 = pneg %p162
        %p303 = scmp.lt.s32.totalorder %s26, 1
        %s304 = scalar_select %p303, %s26, 1
        %s305 = scalar_lea.vmem %s4, %s304
        %s306 = sadd.s32 %s26, %s27
        %s307 = sadd.s32 %s26, %s27
        %s308 = sadd.s32 %s26, %s27
        %p309 = scmp.lt.s32.totalorder %s26, 1
        %s310 = scalar_select %p309, %s26, 1
        %s311 = scalar_lea.vmem %s3, %s310
        %p312 = scmp.lt.s32.totalorder %s26, 1
        %s313 = scalar_select %p312, %s26, 1
        %s314 = scalar_lea.vmem %s4, %s313
        %p315 = scmp.eq.s32.totalorder %s27, 0
        // Predicated region
        $region45: #{tpu_custom_call.1} parent=31 // pred_check
          %p316 = pneg %p315
        $region46: #{tpu_custom_call.1} parent=31 // pred_check_branch
          %318 = sbr.rel (%p316) target = $region48
        $region47: #{tpu_custom_call.1} parent=31 // pred_region
          %vm319 = vcmask 0
          %320 = vst.msk [vmem:[%s311] sm:$0x1] %vm319, 0.0
          %321 = vst.msk [vmem:[%s314] sm:$0x1] %vm319, 0.0
        $region48: #{tpu_custom_call.1} parent=31 // pred_fallthru
          _
        %v322 = vld [vmem:[%s252] sm:$0xff]
        %v323 = vld [vmem:[%s261] sm:$0xff]
        %v324 = vld [vmem:[%s270] sm:$0xff]
        %v325 = vmax.f32 %v322, %v323
        %v326 = vsub.f32 %v322, %v325
        %v327 = vmul.f32 %v326, 1.442695
        %v328 = vpow.pop %v327
        %v329 = vsub.f32 %v323, %v325
        %v330 = vmul.f32 %v329, 1.442695
        %v331 = vpow.pop %v330
        %v332 = vadd.f32 %v328, %v331
        %v333 = vlog2.pop %v332
        %v334 = vmul.f32 %v333, 0.6931472
        %v335 = vadd.f32 %v325, %v334
        %vm336 = vcmp.eq.s32.totalorder %v324, 1
        %v337 = vsel %vm336, %v323, %v322
        %v338 = vsub.f32 %v335, %v337
        %v339 = vsel %vm336, 0.8, 0.2
        %vm340 = vcmp.ge.s32.totalorder %v324, 0
        %v341 = vsel %vm340, %v339, 0.0
        %v342 = vld [vmem:[%s311] sm:$0x1]
        %v343 = vmul.f32 %v341, %v338
        %344 = vadd.xlane.f32.xlu0 %v343
        %v345 = vpop.xlane.xlu0 %344
        %v346 = vrot.slane %v345, 4
        %v347 = vadd.f32 %v345, %v346
        %v348 = vrot.slane %v347, 2
        %v349 = vadd.f32 %v347, %v348
        %v350 = vrot.slane %v349, 1
        %v351 = vadd.f32 %v349, %v350
        %s352 = vtos %v351
        %v353 = vstv %s352
        %v354 = vadd.f32 %v342, %v353
        %vm355 = vcmask 0
        %356 = vst.msk [vmem:[%s311] sm:$0x1] %vm355, %v354
        %v357 = vld [vmem:[%s314] sm:$0x1]
        %358 = vadd.xlane.f32.xlu0 %v341
        %v359 = vpop.xlane.xlu0 %358
        %v360 = vrot.slane %v359, 4
        %v361 = vadd.f32 %v359, %v360
        %v362 = vrot.slane %v361, 2
        %v363 = vadd.f32 %v361, %v362
        %v364 = vrot.slane %v363, 1
        %v365 = vadd.f32 %v363, %v364
        %s366 = vtos %v365
        %v367 = vstv %s366
        %v368 = vadd.f32 %v357, %v367
        %369 = vst.msk [vmem:[%s314] sm:$0x1] %vm355, %v368
        %p370 = scmp.lt.s32.totalorder %s26, 1
        %s371 = scalar_select %p370, %s26, 1
        %s372 = scalar_lea.vmem %s3, %s371
        %p373 = scmp.lt.s32.totalorder %s26, 1
        %s374 = scalar_select %p373, %s26, 1
        %s375 = scalar_lea.vmem %s4, %s374
        // Predicated region
        $region49: #{tpu_custom_call.1} parent=31 // pred_check
          %p376 = pneg %p136
        $region50: #{tpu_custom_call.1} parent=31 // pred_check_branch
          %378 = sbr.rel (%p376) target = $region52
        $region51: #{tpu_custom_call.1} parent=31 // pred_region
          _
        $region52: #{tpu_custom_call.1} parent=31 // pred_fallthru
          _
        // Predicated region
        $region53: #{tpu_custom_call.1} parent=31 // pred_check
          %p379 = pneg %p162
        $region54: #{tpu_custom_call.1} parent=31 // pred_check_branch
          %381 = sbr.rel (%p379) target = $region56
        $region55: #{tpu_custom_call.1} parent=31 // pred_region
          _
        $region56: #{tpu_custom_call.1} parent=31 // pred_fallthru
          _
      $region32: #{tpu_custom_call.1} parent=5 // pred_fallthru
        _
      %p382 = scmp.le.s32.totalorder 2, %s17
      // Predicated region
      $region57: #{tpu_custom_call.1} parent=5 // pred_check
        %p383 = pneg %p382
      $region58: #{tpu_custom_call.1} parent=5 // pred_check_branch
        %385 = sbr.rel (%p383) target = $region60
      $region59: #{tpu_custom_call.1} parent=5 // pred_region
        %s386 = ssub.s32 %s17, 2
        // Predicated region
        $region61: #{tpu_custom_call.1} parent=59 // pred_check
          %p387 = pneg %p142
        $region62: #{tpu_custom_call.1} parent=59 // pred_check_branch
          %389 = sbr.rel (%p387) target = $region64
        $region63: #{tpu_custom_call.1} parent=59 // pred_region
          %p390 = scmp.lt.s32.totalorder %s28, 1
          %s391 = scalar_select %p390, %s28, 1
          %s392 = scalar_lea.vmem %s3, %s391
        $region64: #{tpu_custom_call.1} parent=59 // pred_fallthru
          _
        // Predicated region
        $region65: #{tpu_custom_call.1} parent=59 // pred_check
          %p393 = pneg %p168
        $region66: #{tpu_custom_call.1} parent=59 // pred_check_branch
          %395 = sbr.rel (%p393) target = $region68
        $region67: #{tpu_custom_call.1} parent=59 // pred_region
          %p396 = scmp.lt.s32.totalorder %s28, 1
          %s397 = scalar_select %p396, %s28, 1
          %s398 = scalar_lea.vmem %s4, %s397
        $region68: #{tpu_custom_call.1} parent=59 // pred_fallthru
          _
      $region60: #{tpu_custom_call.1} parent=5 // pred_fallthru
        _
    $region6: #{tpu_custom_call.1} parent=1 // loop_footer
      %s21 = sadd.s32 1, %s17
    $region7: #{tpu_custom_call.1} parent=1 // loop_footer_branch
      %16 = sbr.rel target = $region3
    $region8: #{tpu_custom_call.1} parent=1 // loop_exit
      _
    %399 = vsyncpa [#allocation3], 1
    %s400 = scalar_lea.sflag [#allocation3], 1
    %401 = vsyncpa %s400, 1
    %402 = vsyncpa [#allocation5], 1
    %s403 = scalar_lea.sflag [#allocation5], 1
    %404 = vsyncpa %s403, 1

</llo_original>
